<compile_context>
chip_gen: v7x
topology: tpu7x:2x2x1
jax: 0.10.0
libtpu: 0.0.40
codegen_flags: <defaults>
</compile_context>

<pallas_src>
from math import prod

import jax
import jax.numpy as jnp
from jax.experimental import pallas as pl
from jax.experimental.pallas import tpu as pltpu


def _normal_params_kernel(x_ref, w_ref, b_ref, loc_ref, scale_ref):
    # x_ref:     (batch, in_dim)   bf16, resident across the whole grid
    # w_ref:     (2, in_dim, tn)   bf16, pipelined tile-by-tile (loc, scale)
    # b_ref:     (2, n_pad)        f32,  resident across the whole grid
    # loc_ref:   (batch, tn)       output dtype
    # scale_ref: (batch, tn)       output dtype
    tn = loc_ref.shape[-1]
    off = pl.multiple_of(pl.program_id(0) * tn, 128)

    x = x_ref[...]
    b = b_ref[:, pl.ds(off, tn)]                    # (2, tn) f32, from VMEM

    # loc branch: x @ W_loc + b_loc   (bf16 MXU matmul, f32 accumulation)
    z_loc = jnp.dot(x, w_ref[0], preferred_element_type=jnp.float32) + b[0:1]
    loc_ref[...] = z_loc.astype(loc_ref.dtype)

    # scale branch: softplus(x @ W_scale + b_scale)
    z_sc = jnp.dot(x, w_ref[1], preferred_element_type=jnp.float32) + b[1:2]
    # numerically stable softplus: max(z, 0) + log1p(exp(-|z|))
    sp = jnp.maximum(z_sc, 0.0) + jnp.log1p(jnp.exp(-jnp.abs(z_sc)))
    scale_ref[...] = sp.astype(scale_ref.dtype)


def _pick_lane_tile(n_pad, in_dim, batch, *, w_bytes=2, out_bytes=4,
                    budget_bytes=20 << 20):
    """Largest 128-multiple tile dividing n_pad that fits a VMEM budget.

    Prefers tiles giving >= 2 grid steps so the 'parallel' grid axis can be
    sharded across v7x's two TensorCores.  The budget (default ~20 MiB) keeps
    double-buffered weights + outputs well inside v7x's 64 MiB VMEM and under
    the explicit vmem_limit_bytes we pass to the compiler.
    """
    cands = []
    t = 128
    while t <= n_pad:
        if n_pad % t == 0:
            footprint = (
                2 * 2 * in_dim * t * w_bytes        # 2 branches x 2 buffers of bf16 weights
                + 2 * 2 * batch * t * out_bytes     # 2 outputs x 2 buffers
                + 2 * batch * in_dim * 2            # resident bf16 x (double-buffered)
                + 2 * 8 * n_pad * 4                 # resident bias (sublane-padded)
            )
            if footprint <= budget_bytes:
                cands.append(t)
        t += 128
    if not cands:
        return 128
    multi = [t for t in cands if n_pad // t >= 2]
    return max(multi) if multi else max(cands)


def normal_forward(x, w_loc, b_loc, w_scale, b_scale, out_size):
    """Fused Pallas forward of the `Normal` module.

    Returns (loc, scale), each of shape (batch,) + out_size, which are the
    parameters of torch.distributions.Normal(loc, scale).
    """
    batch, in_dim = x.shape
    n = prod(out_size)
    assert w_loc.shape == (in_dim, n) and w_scale.shape == (in_dim, n)
    out_dtype = x.dtype

    # --- one-time weight/bias prep (wrapper side) -------------------------
    # Stack loc/scale weights -> one contiguous pipelined stream, bf16.
    w_cat = jnp.stack([w_loc, w_scale], axis=0).astype(jnp.bfloat16)  # (2,K,n)
    b_cat = jnp.stack([b_loc, b_scale], axis=0).astype(jnp.float32)   # (2,n)
    x_bf = x.astype(jnp.bfloat16)

    # Pad N up to a multiple of 128 for lane-dense stores.
    n_pad = ((n + 127) // 128) * 128
    if n_pad != n:
        w_cat = jnp.pad(w_cat, ((0, 0), (0, 0), (0, n_pad - n)))
        b_cat = jnp.pad(b_cat, ((0, 0), (0, n_pad - n)))

    tn = _pick_lane_tile(n_pad, in_dim, batch)
    grid = (n_pad // tn,)

    cost = pl.CostEstimate(
        flops=2 * batch * in_dim * (2 * n_pad),
        transcendentals=2 * batch * n_pad,
        bytes_accessed=(w_cat.size * 2 + x_bf.size * 2 + b_cat.size * 4
                        + 2 * batch * n_pad * jnp.dtype(out_dtype).itemsize),
    )

    loc2d, scale2d = pl.pallas_call(
        _normal_params_kernel,
        out_shape=(
            jax.ShapeDtypeStruct((batch, n_pad), out_dtype),
            jax.ShapeDtypeStruct((batch, n_pad), out_dtype),
        ),
        grid=grid,
        in_specs=[
            # x stays resident (same block every step -> DMA'd once).
            pl.BlockSpec((batch, in_dim), lambda j: (0, 0)),
            # Both weight matrices in one pipelined stream per lane tile.
            pl.BlockSpec((2, in_dim, tn), lambda j: (0, 0, j)),
            # Biases fully resident; kernel slices the current tile.
            pl.BlockSpec((2, n_pad), lambda j: (0, 0)),
        ],
        out_specs=(
            pl.BlockSpec((batch, tn), lambda j: (0, j)),
            pl.BlockSpec((batch, tn), lambda j: (0, j)),
        ),
        compiler_params=pltpu.CompilerParams(
            dimension_semantics=("parallel",),
            vmem_limit_bytes=48 << 20,
        ),
        cost_estimate=cost,
    )(x_bf, w_cat, b_cat)

    if n_pad != n:
        loc2d = loc2d[:, :n]
        scale2d = scale2d[:, :n]

    # View(out_size): metadata-only reshape, done outside the kernel.
    loc = loc2d.reshape((batch,) + tuple(out_size))
    scale = scale2d.reshape((batch,) + tuple(out_size))
    # TODO(synk): torch.distributions.Normal object itself has no Pallas/JAX
    # kernel equivalent; we return its (loc, scale) parameterization.
    return loc, scale


if __name__ == "__main__":
    key = jax.random.PRNGKey(0)
    k_x, k_wl, k_bl, k_ws, k_bs = jax.random.split(key, 5)

    batch, in_dim = 2, 32
    out_size = (4, 8, 8)          # prod = 256 output features
    n = prod(out_size)

    x = jax.random.normal(k_x, (batch, in_dim), dtype=jnp.float32)
    w_loc = jax.random.normal(k_wl, (in_dim, n), dtype=jnp.float32) * 0.1
    b_loc = jax.random.normal(k_bl, (n,), dtype=jnp.float32) * 0.1
    w_scale = jax.random.normal(k_ws, (in_dim, n), dtype=jnp.float32) * 0.1
    b_scale = jax.random.normal(k_bs, (n,), dtype=jnp.float32) * 0.1

    loc, scale = normal_forward(x, w_loc, b_loc, w_scale, b_scale, out_size)
    loc, scale = jax.block_until_ready((loc, scale))

    # Pure-JAX f32 reference (same math as the PyTorch module's forward).
    ref_loc = (x @ w_loc + b_loc).reshape((batch,) + out_size)
    ref_scale = jax.nn.softplus(x @ w_scale + b_scale).reshape(
        (batch,) + out_size)

    assert loc.shape == (batch,) + out_size, loc.shape
    assert scale.shape == (batch,) + out_size, scale.shape
    assert loc.dtype == x.dtype and scale.dtype == x.dtype
    assert bool(jnp.all(scale > 0))
    # Weights/activations are streamed in bf16 (f32 accumulation), so compare
    # against the f32 reference with a bf16-appropriate tolerance.
    assert bool(jnp.allclose(loc, ref_loc, atol=2e-2, rtol=2e-2))
    assert bool(jnp.allclose(scale, ref_scale, atol=2e-2, rtol=2e-2))

    print("KERNEL_OK")
</pallas_src>

<mosaic_0001>
module attributes {stable_mosaic.version = 11 : i64} {
  func.func @_normal_params_kernel(%arg0: i32, %arg1: memref<2x32xbf16, #tpu.memory_space<vmem>>, %arg2: memref<2x32x128xbf16, #tpu.memory_space<vmem>>, %arg3: memref<2x256xf32, #tpu.memory_space<vmem>>, %arg4: memref<2x128xf32, #tpu.memory_space<vmem>>, %arg5: memref<2x128xf32, #tpu.memory_space<vmem>>) attributes {dimension_semantics = [#tpu.dimension_semantics<parallel>], iteration_bounds = array<i64: 2>, scalar_prefetch = 0 : i64, scratch_operands = 0 : i64, tpu.core_type = #tpu.core_type<tc>, window_params = [{pipeline_mode = #tpu.pipeline_mode<synchronous>, transform_indices = @transform_0, window_bounds = array<i64: 2, 32>}, {transform_indices = @transform_1, window_bounds = array<i64: 2, 32, 128>}, {pipeline_mode = #tpu.pipeline_mode<synchronous>, transform_indices = @transform_2, window_bounds = array<i64: 2, 256>}, {transform_indices = @transform_3, window_bounds = array<i64: 2, 128>}, {transform_indices = @transform_4, window_bounds = array<i64: 2, 128>}]} {
    %c128_i32 = arith.constant 128 : i32
    %0 = arith.muli %arg0, %c128_i32 : i32
    %1 = tpu.assume_multiple %0, 128 : i32
    %c0 = arith.constant 0 : index
    %c0_0 = arith.constant 0 : index
    %2 = vector.load %arg1[%c0, %c0_0] : memref<2x32xbf16, #tpu.memory_space<vmem>>, vector<2x32xbf16>
    %c0_1 = arith.constant 0 : index
    %3 = arith.index_cast %1 : i32 to index
    %4 = vector.load %arg3[%c0_1, %3] : memref<2x256xf32, #tpu.memory_space<vmem>>, vector<2x128xf32>
    %c0_2 = arith.constant 0 : index
    %c0_3 = arith.constant 0 : index
    %c0_4 = arith.constant 0 : index
    %5 = vector.load %arg2[%c0_2, %c0_3, %c0_4] : memref<2x32x128xbf16, #tpu.memory_space<vmem>>, vector<1x32x128xbf16>
    %6 = vector.shape_cast %5 : vector<1x32x128xbf16> to vector<32x128xbf16>
    %cst = arith.constant dense<0.000000e+00> : vector<2x128xf32>
    %7 = tpu.matmul %2, %6, %cst {dimension_numbers = #tpu.dot_dimension_numbers<[1], [0], [0], [1], [0, 0, 1, 1], [], []>} : vector<2x32xbf16>, vector<32x128xbf16>, vector<2x128xf32> -> vector<2x128xf32>
    %8 = vector.extract_strided_slice %4 {offsets = [0, 0], sizes = [1, 128], strides = [1, 1]} : vector<2x128xf32> to vector<1x128xf32>
    %9 = vector.broadcast %8 : vector<1x128xf32> to vector<2x128xf32>
    %10 = arith.addf %7, %9 : vector<2x128xf32>
    %c0_5 = arith.constant 0 : index
    %c0_6 = arith.constant 0 : index
    %11 = vector.load %arg4[%c0_5, %c0_6] : memref<2x128xf32, #tpu.memory_space<vmem>>, vector<2x128xf32>
    tpu.vector_store %arg4[%c0_5, %c0_6], %10 {strides = array<i32>} : memref<2x128xf32, #tpu.memory_space<vmem>>, vector<2x128xf32>,
    %c1 = arith.constant 1 : index
    %c0_7 = arith.constant 0 : index
    %c0_8 = arith.constant 0 : index
    %12 = vector.load %arg2[%c1, %c0_7, %c0_8] : memref<2x32x128xbf16, #tpu.memory_space<vmem>>, vector<1x32x128xbf16>
    %13 = vector.shape_cast %12 : vector<1x32x128xbf16> to vector<32x128xbf16>
    %cst_9 = arith.constant dense<0.000000e+00> : vector<2x128xf32>
    %14 = tpu.matmul %2, %13, %cst_9 {dimension_numbers = #tpu.dot_dimension_numbers<[1], [0], [0], [1], [0, 0, 1, 1], [], []>} : vector<2x32xbf16>, vector<32x128xbf16>, vector<2x128xf32> -> vector<2x128xf32>
    %15 = vector.extract_strided_slice %4 {offsets = [1, 0], sizes = [1, 128], strides = [1, 1]} : vector<2x128xf32> to vector<1x128xf32>
    %16 = vector.broadcast %15 : vector<1x128xf32> to vector<2x128xf32>
    %17 = arith.addf %14, %16 : vector<2x128xf32>
    %cst_10 = arith.constant 0.000000e+00 : f32
    %18 = vector.broadcast %cst_10 : f32 to vector<2x128xf32>
    %19 = arith.maximumf %17, %18 : vector<2x128xf32>
    %20 = math.absf %17 : vector<2x128xf32>
    %cst_11 = arith.constant 0.000000e+00 : f32
    %21 = vector.broadcast %cst_11 : f32 to vector<2x128xf32>
    %22 = arith.subf %21, %20 : vector<2x128xf32>
    %23 = math.exp %22 : vector<2x128xf32>
    %24 = math.log1p %23 : vector<2x128xf32>
    %25 = arith.addf %19, %24 : vector<2x128xf32>
    %c0_12 = arith.constant 0 : index
    %c0_13 = arith.constant 0 : index
    %26 = vector.load %arg5[%c0_12, %c0_13] : memref<2x128xf32, #tpu.memory_space<vmem>>, vector<2x128xf32>
    tpu.vector_store %arg5[%c0_12, %c0_13], %25 {strides = array<i32>} : memref<2x128xf32, #tpu.memory_space<vmem>>, vector<2x128xf32>,
    return
  }
  func.func @transform_0(%arg0: i32) -> (i32, i32) {
    %c0_i32 = arith.constant 0 : i32
    %c0_i32_0 = arith.constant 0 : i32
    %c0_i32_1 = arith.constant 0 : i32
    return %c0_i32, %c0_i32_0 : i32, i32
  }
  func.func @transform_1(%arg0: i32) -> (i32, i32, i32) {
    %c0_i32 = arith.constant 0 : i32
    %c0_i32_0 = arith.constant 0 : i32
    %c0_i32_1 = arith.constant 0 : i32
    return %c0_i32, %c0_i32_0, %arg0 : i32, i32, i32
  }
  func.func @transform_2(%arg0: i32) -> (i32, i32) {
    %c0_i32 = arith.constant 0 : i32
    %c0_i32_0 = arith.constant 0 : i32
    %c0_i32_1 = arith.constant 0 : i32
    return %c0_i32, %c0_i32_0 : i32, i32
  }
  func.func @transform_3(%arg0: i32) -> (i32, i32) {
    %c0_i32 = arith.constant 0 : i32
    %c0_i32_0 = arith.constant 0 : i32
    return %c0_i32, %arg0 : i32, i32
  }
  func.func @transform_4(%arg0: i32) -> (i32, i32) {
    %c0_i32 = arith.constant 0 : i32
    %c0_i32_0 = arith.constant 0 : i32
    return %c0_i32, %arg0 : i32, i32
  }
}

</mosaic_0001>

<llo_original>
// kernel: tpu_custom_call.1
$region0: #{tpu_custom_call.1}
  #allocation0 [shape = 'u32[]', space=smem, size = 0x4, offset = 0x4, fixed_abs, tag = 'smem constant byte address 0x4 - core index']
  #allocation1 [shape = 'u32[144,128]{1,0:T(1,128)}', space=vmem, size = 0x12000, scoped, tag = 'internal scratch']
  %s0 = inlined_call_operand.hbm [shape: bf16[2,32], index: 0, kind: input, shape index: {}]
  %s1 = inlined_call_operand.hbm [shape: bf16[2,32,256], index: 1, kind: input, shape index: {}]
  %s2 = inlined_call_operand.vmem [shape: f32[2,256], index: 2, kind: input, shape index: {}]
  %s3 = inlined_call_operand.hbm [shape: f32[2,256], index: 3, kind: output, shape index: {0}]
  %s4 = inlined_call_operand.hbm [shape: f32[2,256], index: 4, kind: output, shape index: {1}]
  %5 = xla_tuple %s3, %s4
  %s6 = sld [smem:[#allocation0]]
  $region61: #{tpu_custom_call.1} parent=0
    _
  %s8 = ssub.s32 1, %s6
  %s9 = scalar_select 0, %s8, %s6
  $region1: #{tpu_custom_call.1} parent=0
    #allocation2 [shape = 'u8[512]{0}', space=vmem, size = 0x400, scoped, tag = 'input window, operand 0, single buffered']
    #allocation3 [shape = 's32[2]{0}', space=sflag, size = 0x8, scoped, tag = 'scoped memory for tpu_custom_call.1']
    #allocation4 [shape = 's32[2]{0}', space=sflag, size = 0x8, scoped, tag = 'scoped memory for tpu_custom_call.1']
    #allocation5 [shape = 'u8[32768]{0}', space=vmem, size = 0x8000, scoped, tag = 'input window, operand 1']
    #allocation6 [shape = 's32[2]{0}', space=sflag, size = 0x8, scoped, tag = 'scoped memory for tpu_custom_call.1']
    #allocation7 [shape = 'u8[2048]{0}', space=vmem, size = 0x800, scoped, tag = 'output window, operand 0']
    #allocation8 [shape = 'u8[2048]{0}', space=vmem, size = 0x800, scoped, tag = 'output window, operand 1']
    #allocation9 [shape = 's32[2]{0}', space=sflag, size = 0x8, scoped, tag = 'scoped memory for tpu_custom_call.1']
    %10 = vsyncpa [#allocation3], 0
    %11 = vsyncpa [#allocation6], 0
    %s12 = scalar_lea.sflag [#allocation6], 1
    %13 = vsyncpa %s12, 0
    %14 = vsyncpa [#allocation4], 0
    %s15 = scalar_lea.sflag [#allocation4], 1
    %16 = vsyncpa %s15, 0
    %17 = vsyncpa [#allocation9], 0
    %s18 = scalar_lea.sflag [#allocation9], 1
    %19 = vsyncpa %s18, 0
    loop: start=0, step=1, limit=4
    $region2: #{tpu_custom_call.1} parent=1 // loop_pre_header
      _
    $region3: #{tpu_custom_call.1} parent=1 // loop_header
      %s21 = sphi 0, %s25
      %p22 = scmp.ge.s32.totalorder %s21, 4
      %s29 = sphi 0, %s29
      %s31 = sphi 0, %s29
      %s32 = sphi 0, %s31
      %s46 = sphi 0, %s32
      %s52 = sphi 0, %s54
      %s55 = sphi 0, %s52
      %s56 = sphi 0, %s55
      %s72 = sphi 0, %s56
      %s76 = sphi 0, %s76
      %s78 = sphi 0, %s76
      %s79 = sphi 0, %s78
      %s93 = sphi 0, %s79
      %s99 = sphi 0, %s101
      %s102 = sphi 0, %s99
      %s103 = sphi 0, %s102
      %s119 = sphi 0, %s103
      %s125 = sphi 0, %s127
      %s128 = sphi 0, %s125
      %s129 = sphi 0, %s128
      %s145 = sphi 0, %s129
    $region4: #{tpu_custom_call.1} parent=1 // loop_header_branch
      %24 = sbr.rel (%p22) target = $region8
    $region5: #{tpu_custom_call.1} parent=1 // loop_body
      %s26 = ssub.s32 %s21, 1
      %s27 = ssub.s32 %s21, 2
      %s28 = sadd.s32 %s21, 1
      %s30 = sadd.s32 %s29, 1
      %p33 = scmp.eq.s32.totalorder %s21, 1
      %p34 = scmp.ne.s32.totalorder %s29, %s31
      %p35 = scmp.eq.s32.totalorder %s21, 0
      %p36 = por %p34, %p35
      %p37 = scmp.ne.s32.totalorder %s29, %s31
      %p38 = scmp.eq.s32.totalorder %s26, 1
      %p39 = por %p37, %p38
      %p40 = scmp.ne.s32.totalorder %s31, %s32
      %p41 = scmp.eq.s32.totalorder %s26, 0
      %p42 = por %p40, %p41
      %p43 = scmp.ne.s32.totalorder %s31, %s32
      %p44 = scmp.eq.s32.totalorder %s27, 1
      %p45 = por %p43, %p44
      %p47 = scmp.ne.s32.totalorder %s32, %s46
      %p48 = scmp.eq.s32.totalorder %s27, 0
      %p49 = por %p47, %p48
      %s50 = ssub.s32 %s21, %s28
      %p51 = scmp.eq.s32.totalorder %s50, 0
      %s53 = sadd.s32 %s52, 1
      %s54 = scalar_select %p51, %s52, %s53
      %p57 = pneg %p51
      %p58 = scmp.eq.s32.totalorder %s21, 1
      %p59 = por %p57, %p58
      %p60 = scmp.ne.s32.totalorder %s52, %s55
      %p61 = scmp.eq.s32.totalorder %s21, 0
      %p62 = por %p60, %p61
      %p63 = scmp.ne.s32.totalorder %s52, %s55
      %p64 = scmp.eq.s32.totalorder %s26, 1
      %p65 = por %p63, %p64
      %p66 = scmp.ne.s32.totalorder %s55, %s56
      %p67 = scmp.eq.s32.totalorder %s26, 0
      %p68 = por %p66, %p67
      %p69 = scmp.ne.s32.totalorder %s55, %s56
      %p70 = scmp.eq.s32.totalorder %s27, 1
      %p71 = por %p69, %p70
      %p73 = scmp.ne.s32.totalorder %s56, %s72
      %p74 = scmp.eq.s32.totalorder %s27, 0
      %p75 = por %p73, %p74
      %s77 = sadd.s32 %s76, 1
      %p80 = scmp.eq.s32.totalorder %s21, 1
      %p81 = scmp.ne.s32.totalorder %s76, %s78
      %p82 = scmp.eq.s32.totalorder %s21, 0
      %p83 = por %p81, %p82
      %p84 = scmp.ne.s32.totalorder %s76, %s78
      %p85 = scmp.eq.s32.totalorder %s26, 1
      %p86 = por %p84, %p85
      %p87 = scmp.ne.s32.totalorder %s78, %s79
      %p88 = scmp.eq.s32.totalorder %s26, 0
      %p89 = por %p87, %p88
      %p90 = scmp.ne.s32.totalorder %s78, %s79
      %p91 = scmp.eq.s32.totalorder %s27, 1
      %p92 = por %p90, %p91
      %p94 = scmp.ne.s32.totalorder %s79, %s93
      %p95 = scmp.eq.s32.totalorder %s27, 0
      %p96 = por %p94, %p95
      %s97 = ssub.s32 %s21, %s28
      %p98 = scmp.eq.s32.totalorder %s97, 0
      %s100 = sadd.s32 %s99, 1
      %s101 = scalar_select %p98, %s99, %s100
      %p104 = pneg %p98
      %p105 = scmp.eq.s32.totalorder %s21, 1
      %p106 = por %p104, %p105
      %p107 = scmp.ne.s32.totalorder %s99, %s102
      %p108 = scmp.eq.s32.totalorder %s21, 0
      %p109 = por %p107, %p108
      %p110 = scmp.ne.s32.totalorder %s99, %s102
      %p111 = scmp.eq.s32.totalorder %s26, 1
      %p112 = por %p110, %p111
      %p113 = scmp.ne.s32.totalorder %s102, %s103
      %p114 = scmp.eq.s32.totalorder %s26, 0
      %p115 = por %p113, %p114
      %p116 = scmp.ne.s32.totalorder %s102, %s103
      %p117 = scmp.eq.s32.totalorder %s27, 1
      %p118 = por %p116, %p117
      %p120 = scmp.ne.s32.totalorder %s103, %s119
      %p121 = scmp.eq.s32.totalorder %s27, 0
      %p122 = por %p120, %p121
      %s123 = ssub.s32 %s21, %s28
      %p124 = scmp.eq.s32.totalorder %s123, 0
      %s126 = sadd.s32 %s125, 1
      %s127 = scalar_select %p124, %s125, %s126
      %p130 = pneg %p124
      %p131 = scmp.eq.s32.totalorder %s21, 1
      %p132 = por %p130, %p131
      %p133 = scmp.ne.s32.totalorder %s125, %s128
      %p134 = scmp.eq.s32.totalorder %s21, 0
      %p135 = por %p133, %p134
      %p136 = scmp.ne.s32.totalorder %s125, %s128
      %p137 = scmp.eq.s32.totalorder %s26, 1
      %p138 = por %p136, %p137
      %p139 = scmp.ne.s32.totalorder %s128, %s129
      %p140 = scmp.eq.s32.totalorder %s26, 0
      %p141 = por %p139, %p140
      %p142 = scmp.ne.s32.totalorder %s128, %s129
      %p143 = scmp.eq.s32.totalorder %s27, 1
      %p144 = por %p142, %p143
      %p146 = scmp.ne.s32.totalorder %s129, %s145
      %p147 = scmp.eq.s32.totalorder %s27, 0
      %p148 = por %p146, %p147
      %p149 = scmp.le.s32.totalorder 1, %s21
      %p150 = scmp.lt.s32.totalorder %s21, 3
      %p151 = pnand %p149, %p150
      %p152 = pneg %p151
      // Predicated region
      $region9: #{tpu_custom_call.1} parent=5 // pred_check
        _
      $region10: #{tpu_custom_call.1} parent=5 // pred_check_branch
        %154 = sbr.rel (%p151) target = $region12
      $region11: #{tpu_custom_call.1} parent=5 // pred_region
        %s155 = ssub.s32 %s21, 1
        // Predicated region
        $region13: #{tpu_custom_call.1} parent=11 // pred_check
          %p156 = pneg %p42
        $region14: #{tpu_custom_call.1} parent=11 // pred_check_branch
          %158 = sbr.rel (%p156) target = $region16
        $region15: #{tpu_custom_call.1} parent=11 // pred_region
          %s160 = ssub.s32 16, 16
          %161 = vsyncadd [#allocation3], %s160
          %s163 = sshll.u32 [#allocation2], 4
          %s164 = int_to_ptr.vmem [resolvable:$true] %s163
          %166 = dma.hbm_to_vmem [thread:$0]  %s0, 16, %s164, [#allocation3]
        $region16: #{tpu_custom_call.1} parent=11 // pred_fallthru
          _
        // Predicated region
        $region17: #{tpu_custom_call.1} parent=11 // pred_check
          %p167 = pneg %p89
        $region18: #{tpu_custom_call.1} parent=11 // pred_check_branch
          %169 = sbr.rel (%p167) target = $region20
        $region19: #{tpu_custom_call.1} parent=11 // pred_region
          _
        $region20: #{tpu_custom_call.1} parent=11 // pred_fallthru
          _
      $region12: #{tpu_custom_call.1} parent=5 // pred_fallthru
        _
      %p170 = scmp.lt.s32.totalorder %s21, 2
      // Predicated region
      $region21: #{tpu_custom_call.1} parent=5 // pred_check
        %p171 = pneg %p170
      $region22: #{tpu_custom_call.1} parent=5 // pred_check_branch
        %173 = sbr.rel (%p171) target = $region24
      $region23: #{tpu_custom_call.1} parent=5 // pred_region
        // Predicated region
        $region25: #{tpu_custom_call.1} parent=23 // pred_check
          %p174 = pneg %p62
        $region26: #{tpu_custom_call.1} parent=23 // pred_check_branch
          %176 = sbr.rel (%p174) target = $region28
        $region27: #{tpu_custom_call.1} parent=23 // pred_region
          %s177 = sand.u32 %s52, 1
          %s178 = scalar_lea.sflag [#allocation6], %s177
          %s179 = sand.u32 %s52, 1
          %s180 = smul.addr %s179, 32
          %s181 = scalar_lea.vmem [#allocation5], %s180
          %s183 = ssub.s32 512, 512
          %184 = vsyncadd %s178, %s183
          %s185 = smul.addr %s21, 64
          %s186 = scalar_lea.hbm %s1, %s185
          %s187 = sshll.u32 %s181, 4
          %s188 = int_to_ptr.vmem [resolvable:$true] %s187
          %193 = dma.hbm_to_vmem [thread:$0]  %s186, 512, %s188, %s178, 128, 64, 4
        $region28: #{tpu_custom_call.1} parent=23 // pred_fallthru
          _
      $region24: #{tpu_custom_call.1} parent=5 // pred_fallthru
        _
      %p194 = scmp.le.s32.totalorder 1, %s21
      %p195 = scmp.lt.s32.totalorder %s21, 3
      %p196 = pnand %p194, %p195
      %p197 = pneg %p196
      // Predicated region
      $region29: #{tpu_custom_call.1} parent=5 // pred_check
        _
      $region30: #{tpu_custom_call.1} parent=5 // pred_check_branch
        %199 = sbr.rel (%p196) target = $region32
      $region31: #{tpu_custom_call.1} parent=5 // pred_region
        %s200 = ssub.s32 %s21, 1
        // Predicated region
        $region33: #{tpu_custom_call.1} parent=31 // pred_check
          %p201 = pneg %p42
        $region34: #{tpu_custom_call.1} parent=31 // pred_check_branch
          %203 = sbr.rel (%p201) target = $region36
        $region35: #{tpu_custom_call.1} parent=31 // pred_region
          %204 = dma.done [#allocation3], 16
        $region36: #{tpu_custom_call.1} parent=31 // pred_fallthru
          _
        %s205 = sand.u32 %s55, 1
        %s206 = scalar_lea.sflag [#allocation6], %s205
        %s207 = sand.u32 %s55, 1
        %s208 = smul.addr %s207, 32
        %s209 = scalar_lea.vmem [#allocation5], %s208
        // Predicated region
        $region37: #{tpu_custom_call.1} parent=31 // pred_check
          %p210 = pneg %p68
        $region38: #{tpu_custom_call.1} parent=31 // pred_check_branch
          %212 = sbr.rel (%p210) target = $region40
        $region39: #{tpu_custom_call.1} parent=31 // pred_region
          %213 = dma.done %s206, 512
        $region40: #{tpu_custom_call.1} parent=31 // pred_fallthru
          _
        %p214 = pneg %p42
        %p215 = pneg %p39
        %s216 = sand.u32 %s55, 1
        %s217 = scalar_lea.sflag [#allocation6], %s216
        %s218 = sand.u32 %s55, 1
        %s219 = smul.addr %s218, 32
        %s220 = scalar_lea.vmem [#allocation5], %s219
        %p221 = pneg %p68
        %p222 = pneg %p65
        %p223 = pneg %p89
        %p224 = pneg %p86
        %p225 = pneg %p115
        %p226 = pneg %p112
        %s227 = sand.u32 %s102, 1
        %s228 = scalar_lea.sflag [#allocation4], %s227
        %s229 = sand.u32 %s102, 1
        %s230 = smul.addr %s229, 2
        %s231 = scalar_lea.vmem [#allocation7], %s230
        %p232 = pneg %p141
        %p233 = pneg %p138
        %s234 = sand.u32 %s128, 1
        %s235 = scalar_lea.sflag [#allocation9], %s234
        %s236 = sand.u32 %s128, 1
        %s237 = smul.addr %s236, 2
        %s238 = scalar_lea.vmem [#allocation8], %s237
        %s240 = smul.u32 %s26, 128
        %v241 = vld [vmem:[#allocation2] sm:$0x1]
        %s242 = sshra.s32 %s240, 7
        %s243 = sand.u32 %s240, 127
        %s244 = smul.addr %s242, 2
        %s245 = scalar_lea.vmem %s2, %s244
        %v246 = vld [vmem:[%s245] sm:$0x3]
        %v247 = vld [vmem:[%s209] sm:$0xf]
        %v248 = vld [vmem:[%s209 + $0x4] sm:$0xf]
        %v249 = vld [vmem:[%s209 + $0x8] sm:$0xf]
        %v250 = vld [vmem:[%s209 + $0xc] sm:$0xf]
        %v251 = vlaneseq
        %v252 = vshrl.u32 %v251, 7
        %v253 = vsub.s32 0, %v252
        %v254 = vrot.slane %v246, %v253
        %v259 = vunpack.c.l.b16 %v247
        %v260 = vunpack.c.l.b16 %v248
        %v261 = vunpack.c.l.b16 %v249
        %v262 = vunpack.c.l.b16 %v250
        %v263 = vpack.c.b16 %v260, %v259
        %v264 = vpack.c.b16 %v262, %v261
        %vm267 = vcmask 261120
        %v269 = vsel %vm267, %v241, 0
        %271 = vmatprep.subr.bf16.mxu0 0
        %272 = vmatpush1.bf16.msra.mxu0 %v263
        %273 = vmatprep.subr.bf16.mxu0 0
        %274 = vmatpush1.bf16.msra.mxu0 %v264
        %275 = vmatprep.subr.bf16.mxu0 0
        %276 = vmatpush1.bf16.msra.mxu0 0
        %277 = vmatprep.subr.bf16.mxu0 0
        %278 = vmatpush1.bf16.msra.mxu0 0
        %279 = vmatprep.subr.bf16.mxu0 0
        %280 = vmatpush1.bf16.msra.mxu0 0
        %281 = vmatprep.subr.bf16.mxu0 0
        %282 = vmatpush1.bf16.msra.mxu0 0
        %283 = vmatprep.subr.bf16.mxu0 0
        %284 = vmatpush1.bf16.msra.mxu0 0
        %285 = vmatprep.subr.bf16.mxu0 0
        %286 = vmatpush1.bf16.msra.mxu0 0
        %287 = vmatprep.subr.bf16.mxu0 0
        %288 = vmatpush1.bf16.msra.mxu0 0
        %289 = vmatprep.subr.bf16.mxu0 0
        %290 = vmatpush1.bf16.msra.mxu0 0
        %291 = vmatprep.subr.bf16.mxu0 0
        %292 = vmatpush1.bf16.msra.mxu0 0
        %293 = vmatprep.subr.bf16.mxu0 0
        %294 = vmatpush1.bf16.msra.mxu0 0
        %295 = vmatprep.subr.bf16.mxu0 0
        %296 = vmatpush1.bf16.msra.mxu0 0
        %297 = vmatprep.subr.bf16.mxu0 0
        %298 = vmatpush1.bf16.msra.mxu0 0
        %299 = vmatprep.subr.bf16.mxu0 0
        %300 = vmatpush1.bf16.msra.mxu0 0
        %301 = vmatprep.subr.bf16.mxu0 0
        %302 = vmatpush1.bf16.msra.mxu0 0
        %303 = vmatprep.mubr.bf16.mxu0 0
        %304 = vmatmul.mubr.bf16.gmra.mrb[0].mxu0 %v269
        %v305 = vpop.f32.mrb[0].mxu0
        %v306 = vadd.f32 %v254, %v305
        %v307 = vpop.f32.mrb[0].mxu0
        %v308 = vpop.f32.mrb[0].mxu0
        %v309 = vpop.f32.mrb[0].mxu0
        %310 = vdwg.mxu0
        %311 = vst [vmem:[%s231] sm:$0x3] %v306
        %s312 = scalar_lea.vmem %s209, 16 [#allocation5]
        %v313 = vld [vmem:[%s312] sm:$0xf]
        %v314 = vld [vmem:[%s312 + $0x4] sm:$0xf]
        %v315 = vld [vmem:[%s312 + $0x8] sm:$0xf]
        %v316 = vld [vmem:[%s312 + $0xc] sm:$0xf]
        %v317 = vlaneseq
        %v318 = vshrl.u32 %v317, 7
        %v319 = vsub.s32 1, %v318
        %v320 = vrot.slane %v246, %v319
        %v325 = vunpack.c.l.b16 %v313
        %v326 = vunpack.c.l.b16 %v314
        %v327 = vunpack.c.l.b16 %v315
        %v328 = vunpack.c.l.b16 %v316
        %v329 = vpack.c.b16 %v326, %v325
        %v330 = vpack.c.b16 %v328, %v327
        %333 = vmatprep.subr.bf16.mxu0 0
        %334 = vmatpush1.bf16.msra.mxu0 %v329
        %335 = vmatprep.subr.bf16.mxu0 0
        %336 = vmatpush1.bf16.msra.mxu0 %v330
        %337 = vmatprep.subr.bf16.mxu0 0
        %338 = vmatpush1.bf16.msra.mxu0 0
        %339 = vmatprep.subr.bf16.mxu0 0
        %340 = vmatpush1.bf16.msra.mxu0 0
        %341 = vmatprep.subr.bf16.mxu0 0
        %342 = vmatpush1.bf16.msra.mxu0 0
        %343 = vmatprep.subr.bf16.mxu0 0
        %344 = vmatpush1.bf16.msra.mxu0 0
        %345 = vmatprep.subr.bf16.mxu0 0
        %346 = vmatpush1.bf16.msra.mxu0 0
        %347 = vmatprep.subr.bf16.mxu0 0
        %348 = vmatpush1.bf16.msra.mxu0 0
        %349 = vmatprep.subr.bf16.mxu0 0
        %350 = vmatpush1.bf16.msra.mxu0 0
        %351 = vmatprep.subr.bf16.mxu0 0
        %352 = vmatpush1.bf16.msra.mxu0 0
        %353 = vmatprep.subr.bf16.mxu0 0
        %354 = vmatpush1.bf16.msra.mxu0 0
        %355 = vmatprep.subr.bf16.mxu0 0
        %356 = vmatpush1.bf16.msra.mxu0 0
        %357 = vmatprep.subr.bf16.mxu0 0
        %358 = vmatpush1.bf16.msra.mxu0 0
        %359 = vmatprep.subr.bf16.mxu0 0
        %360 = vmatpush1.bf16.msra.mxu0 0
        %361 = vmatprep.subr.bf16.mxu0 0
        %362 = vmatpush1.bf16.msra.mxu0 0
        %363 = vmatprep.subr.bf16.mxu0 0
        %364 = vmatpush1.bf16.msra.mxu0 0
        %365 = vmatprep.mubr.bf16.mxu0 0
        %366 = vmatmul.mubr.bf16.gmra.mrb[0].mxu0 %v269
        %v367 = vpop.f32.mrb[0].mxu0
        %v368 = vadd.f32 %v320, %v367
        %v369 = vpop.f32.mrb[0].mxu0
        %v370 = vpop.f32.mrb[0].mxu0
        %v371 = vpop.f32.mrb[0].mxu0
        %372 = vdwg.mxu0
        %v373 = vmax.f32 %v368, 0.0
        %v374 = vand.u32 2147483647, %v368
        %v375 = vsub.f32 0.0, %v374
        %v376 = vmul.f32 %v375, 1.442695
        %v377 = vpow.pop %v376
        %v378 = vadd.f32 %v377, 1.0
        %v379 = vlog2.pop %v378
        %v380 = vmul.f32 %v379, 0.6931472
        %v381 = vmul.f32 -0.5, %v377
        %v382 = vadd.f32 %v381, 1.0
        %v383 = vmul.f32 %v382, %v377
        %v384 = vand.u32 2147483647, %v377
        %vm385 = vcmp.lt.f32.partialorder %v384, 0.0004427343
        %v386 = vsel %vm385, %v383, %v380
        %v387 = vadd.f32 %v373, %v386
        %388 = vst [vmem:[%s238] sm:$0x3] %v387
        %s389 = sand.u32 %s102, 1
        %s390 = scalar_lea.sflag [#allocation4], %s389
        %s391 = sand.u32 %s102, 1
        %s392 = smul.addr %s391, 2
        %s393 = scalar_lea.vmem [#allocation7], %s392
        %s394 = sand.u32 %s128, 1
        %s395 = scalar_lea.sflag [#allocation9], %s394
        %s396 = sand.u32 %s128, 1
        %s397 = smul.addr %s396, 2
        %s398 = scalar_lea.vmem [#allocation8], %s397
        // Predicated region
        $region41: #{tpu_custom_call.1} parent=31 // pred_check
          %p399 = pneg %p112
        $region42: #{tpu_custom_call.1} parent=31 // pred_check_branch
          %401 = sbr.rel (%p399) target = $region44
        $region43: #{tpu_custom_call.1} parent=31 // pred_region
          %s403 = ssub.s32 32, 32
          %404 = vsyncadd %s390, %s403
          %s405 = smul.addr %s26, 32
          %s406 = scalar_lea.hbm %s3, %s405
          %s408 = sshll.u32 %s393, 4
          %s409 = int_to_ptr.vmem [resolvable:$true] %s408
          %411 = dma.vmem_to_hbm [thread:$0]  %s409, 32, %s406, %s390
        $region44: #{tpu_custom_call.1} parent=31 // pred_fallthru
          _
        // Predicated region
        $region45: #{tpu_custom_call.1} parent=31 // pred_check
          %p412 = pneg %p138
        $region46: #{tpu_custom_call.1} parent=31 // pred_check_branch
          %414 = sbr.rel (%p412) target = $region48
        $region47: #{tpu_custom_call.1} parent=31 // pred_region
          %s416 = ssub.s32 32, 32
          %417 = vsyncadd %s395, %s416
          %s418 = smul.addr %s26, 32
          %s419 = scalar_lea.hbm %s4, %s418
          %s421 = sshll.u32 %s398, 4
          %s422 = int_to_ptr.vmem [resolvable:$true] %s421
          %424 = dma.vmem_to_hbm [thread:$0]  %s422, 32, %s419, %s395
        $region48: #{tpu_custom_call.1} parent=31 // pred_fallthru
          _
      $region32: #{tpu_custom_call.1} parent=5 // pred_fallthru
        _
      %p425 = scmp.le.s32.totalorder 2, %s21
      // Predicated region
      $region49: #{tpu_custom_call.1} parent=5 // pred_check
        %p426 = pneg %p425
      $region50: #{tpu_custom_call.1} parent=5 // pred_check_branch
        %428 = sbr.rel (%p426) target = $region52
      $region51: #{tpu_custom_call.1} parent=5 // pred_region
        %s429 = ssub.s32 %s21, 2
        // Predicated region
        $region53: #{tpu_custom_call.1} parent=51 // pred_check
          %p430 = pneg %p118
        $region54: #{tpu_custom_call.1} parent=51 // pred_check_branch
          %432 = sbr.rel (%p430) target = $region56
        $region55: #{tpu_custom_call.1} parent=51 // pred_region
          %s433 = sand.u32 %s103, 1
          %s434 = scalar_lea.sflag [#allocation4], %s433
          %s435 = sand.u32 %s103, 1
          %s436 = smul.addr %s435, 2
          %s437 = scalar_lea.vmem [#allocation7], %s436
          %438 = dma.done %s434, 32
        $region56: #{tpu_custom_call.1} parent=51 // pred_fallthru
          _
        // Predicated region
        $region57: #{tpu_custom_call.1} parent=51 // pred_check
          %p439 = pneg %p144
        $region58: #{tpu_custom_call.1} parent=51 // pred_check_branch
          %441 = sbr.rel (%p439) target = $region60
        $region59: #{tpu_custom_call.1} parent=51 // pred_region
          %s442 = sand.u32 %s129, 1
          %s443 = scalar_lea.sflag [#allocation9], %s442
          %s444 = sand.u32 %s129, 1
          %s445 = smul.addr %s444, 2
          %s446 = scalar_lea.vmem [#allocation8], %s445
          %447 = dma.done %s443, 32
        $region60: #{tpu_custom_call.1} parent=51 // pred_fallthru
          _
      $region52: #{tpu_custom_call.1} parent=5 // pred_fallthru
        _
    $region6: #{tpu_custom_call.1} parent=1 // loop_footer
      %s25 = sadd.s32 1, %s21
    $region7: #{tpu_custom_call.1} parent=1 // loop_footer_branch
      %20 = sbr.rel target = $region3
    $region8: #{tpu_custom_call.1} parent=1 // loop_exit
      _
    %448 = vsyncpa [#allocation3], 1
    %s449 = scalar_lea.sflag [#allocation3], 1
    %450 = vsyncpa %s449, 1
    %451 = vsyncpa [#allocation6], 1
    %s452 = scalar_lea.sflag [#allocation6], 1
    %453 = vsyncpa %s452, 1
    %454 = vsyncpa [#allocation4], 1
    %s455 = scalar_lea.sflag [#allocation4], 1
    %456 = vsyncpa %s455, 1
    %457 = vsyncpa [#allocation9], 1
    %s458 = scalar_lea.sflag [#allocation9], 1
    %459 = vsyncpa %s458, 1

</llo_original>
